<compile_context>
chip_gen: v7x
topology: tpu7x:2x2x1
jax: 0.10.0
libtpu: 0.0.40
codegen_flags: <defaults>
</compile_context>

<pallas_src>
import jax
import jax.numpy as jnp
from jax.experimental import pallas as pl
from jax.experimental.pallas import tpu as pltpu


# ----------------------------------------------------------------------------
# Fused Pallas kernels (channel-major: x tiles are (C, tm_pixels)).
# ----------------------------------------------------------------------------
def _fused_two_agent_kernel(xv_ref, xi_ref, wv_ref, bv_ref, wi_ref, bi_ref,
                            wfv_ref, wfi_ref, bf_ref, o_ref):
    """o = WfvT @ relu(WvT@xv + bv) + WfiT @ relu(WiT@xi + bi) + bf  per tile."""
    xv = xv_ref[...].astype(jnp.bfloat16)                               # (C_in, tm)
    xi = xi_ref[...].astype(jnp.bfloat16)
    hv = jnp.dot(wv_ref[...], xv, preferred_element_type=jnp.float32)   # (c_feat, tm)
    hv = jnp.maximum(hv + bv_ref[...], 0.0).astype(jnp.bfloat16)
    hi = jnp.dot(wi_ref[...], xi, preferred_element_type=jnp.float32)
    hi = jnp.maximum(hi + bi_ref[...], 0.0).astype(jnp.bfloat16)
    # TODO(synk): keep hv/hi in f32 for the fusion matmul if accuracy matters;
    # the kernel is mem-bound so the extra MXU passes would be hidden.
    acc = jnp.dot(wfv_ref[...], hv, preferred_element_type=jnp.float32)  # (n_out, tm)
    acc = acc + jnp.dot(wfi_ref[...], hi, preferred_element_type=jnp.float32)
    acc = acc + bf_ref[...]
    o_ref[...] = acc.astype(o_ref.dtype)


def _fused_single_agent_kernel(x_ref, w_ref, b_ref, wf_ref, bf_ref, o_ref):
    """o = WfT @ relu(WT@x + b) + bf  (single-agent encoder + head, fused)."""
    x = x_ref[...].astype(jnp.bfloat16)
    h = jnp.dot(w_ref[...], x, preferred_element_type=jnp.float32)
    h = jnp.maximum(h + b_ref[...], 0.0).astype(jnp.bfloat16)
    acc = jnp.dot(wf_ref[...], h, preferred_element_type=jnp.float32) + bf_ref[...]
    o_ref[...] = acc.astype(o_ref.dtype)


# ----------------------------------------------------------------------------
# Wrapper helpers.
# ----------------------------------------------------------------------------
def _tensorcore_count():
    """v7x has 2 TensorCores/chip; v5e/v6e have 1.  Fail-safe to 1."""
    try:
        return max(1, int(getattr(pltpu.get_tpu_info(), "num_cores", 1)))
    except Exception:
        return 1


def _choose_pixel_tile(P, B, tm_target):
    """Pixel tile (lane axis): multiple of 128 (unmasked stores), large enough
    to amortize the ~0.35us per-grid-step overhead; Pp divides evenly."""
    tm = min(max(128, (tm_target // 128) * 128), max(128, pl.cdiv(P, 128) * 128))
    Pp = pl.cdiv(P, tm) * tm
    # Only on multi-TensorCore parts (v7x): make sure every core gets a program.
    if B * (Pp // tm) < _tensorcore_count() and Pp >= 256 and (Pp // 2) % 128 == 0:
        tm = Pp // 2
    return tm, Pp


def _pad_pixels(x3, Pp):
    P = x3.shape[-1]
    if Pp != P:
        x3 = jnp.pad(x3, ((0, 0), (0, 0), (0, Pp - P)))
    return x3


def _compiler_params():
    # Per-step buffers are <1 MiB even at tm=4096; 32 MiB scoped VMEM is safe
    # on v5e/v6e (128 MiB phys) and leaves headroom on v7x (64 MiB phys).
    return pltpu.CompilerParams(
        dimension_semantics=("parallel", "parallel"),
        vmem_limit_bytes=32 * 1024 * 1024,
    )


def _heads_from_out(out, P, H, W, n_cls):
    """(B, n_out, Pp) bf16 -> NCHW psm/rm.  No transpose needed."""
    B, n_out, _ = out.shape
    heads = out[:, :, :P].reshape(B, n_out, H, W)
    return {"psm": heads[:, :n_cls], "rm": heads[:, n_cls:]}


# ----------------------------------------------------------------------------
# Fused forwards (one pallas_call each).
# ----------------------------------------------------------------------------
def fused_two_agent_forward(xv_nchw, xi_nchw, p_v, p_i, p_fuse, *, tm_target=2048):
    B, C_in, H, W = xv_nchw.shape
    P = H * W
    tm, Pp = _choose_pixel_tile(P, B, tm_target)
    # NCHW -> (B, C, H*W) is a free view: no transpose/cast pass over HBM.
    xv3 = _pad_pixels(xv_nchw.reshape(B, C_in, P), Pp)
    xi3 = _pad_pixels(xi_nchw.reshape(B, C_in, P), Pp)

    # Channel-major (transposed) weights; tiny, VMEM-resident across the grid.
    wv = jnp.transpose(p_v["w"]).astype(jnp.bfloat16)          # (c_feat, C_in)
    bv = p_v["b"].astype(jnp.float32).reshape(-1, 1)           # (c_feat, 1)
    wi = jnp.transpose(p_i["w"]).astype(jnp.bfloat16)
    bi = p_i["b"].astype(jnp.float32).reshape(-1, 1)
    c_feat = wv.shape[0]

    n_cls, n_reg = p_fuse["n_cls"], p_fuse["n_reg"]
    n_out = n_cls + n_reg
    # Split the fusion weight so the feature concat never materializes.
    wf = p_fuse["w"]                                           # (2*c_feat, n_out)
    wfv = jnp.transpose(wf[:c_feat]).astype(jnp.bfloat16)      # (n_out, c_feat)
    wfi = jnp.transpose(wf[c_feat:]).astype(jnp.bfloat16)
    bf = p_fuse["b"].astype(jnp.float32).reshape(-1, 1)        # (n_out, 1)

    flops = 4 * B * Pp * c_feat * (C_in + n_out)
    bytes_accessed = (2 * B * C_in * Pp * 4                    # f32 inputs
                      + B * n_out * Pp * 2                     # bf16 output
                      + (wv.size + wi.size + wfv.size + wfi.size) * 2
                      + (bv.size + bi.size + bf.size) * 4)

    out = pl.pallas_call(
        _fused_two_agent_kernel,
        out_shape=jax.ShapeDtypeStruct((B, n_out, Pp), jnp.bfloat16),
        grid_spec=pltpu.PrefetchScalarGridSpec(
            num_scalar_prefetch=0,
            grid=(B, Pp // tm),
            in_specs=[
                pl.BlockSpec((None, C_in, tm), lambda b, j: (b, 0, j)),   # xv
                pl.BlockSpec((None, C_in, tm), lambda b, j: (b, 0, j)),   # xi
                pl.BlockSpec((c_feat, C_in), lambda b, j: (0, 0)),        # WvT
                pl.BlockSpec((c_feat, 1), lambda b, j: (0, 0)),           # bv
                pl.BlockSpec((c_feat, C_in), lambda b, j: (0, 0)),        # WiT
                pl.BlockSpec((c_feat, 1), lambda b, j: (0, 0)),           # bi
                pl.BlockSpec((n_out, c_feat), lambda b, j: (0, 0)),       # WfvT
                pl.BlockSpec((n_out, c_feat), lambda b, j: (0, 0)),       # WfiT
                pl.BlockSpec((n_out, 1), lambda b, j: (0, 0)),            # bf
            ],
            out_specs=pl.BlockSpec((None, n_out, tm), lambda b, j: (b, 0, j)),
        ),
        compiler_params=_compiler_params(),
        cost_estimate=pl.CostEstimate(flops=flops, transcendentals=0,
                                      bytes_accessed=bytes_accessed),
    )(xv3, xi3, wv, bv, wi, bi, wfv, wfi, bf)

    return _heads_from_out(out, P, H, W, n_cls)


def fused_single_agent_forward(x_nchw, p_enc, p_head, *, tm_target=2048):
    B, C_in, H, W = x_nchw.shape
    P = H * W
    tm, Pp = _choose_pixel_tile(P, B, tm_target)
    x3 = _pad_pixels(x_nchw.reshape(B, C_in, P), Pp)

    w = jnp.transpose(p_enc["w"]).astype(jnp.bfloat16)         # (c_feat, C_in)
    b = p_enc["b"].astype(jnp.float32).reshape(-1, 1)
    c_feat = w.shape[0]
    n_cls, n_reg = p_head["n_cls"], p_head["n_reg"]
    n_out = n_cls + n_reg
    wf = jnp.transpose(p_head["w"]).astype(jnp.bfloat16)       # (n_out, c_feat)
    bf = p_head["b"].astype(jnp.float32).reshape(-1, 1)

    flops = 2 * B * Pp * c_feat * (C_in + n_out)
    bytes_accessed = (B * C_in * Pp * 4 + B * n_out * Pp * 2
                      + (w.size + wf.size) * 2 + (b.size + bf.size) * 4)

    out = pl.pallas_call(
        _fused_single_agent_kernel,
        out_shape=jax.ShapeDtypeStruct((B, n_out, Pp), jnp.bfloat16),
        grid_spec=pltpu.PrefetchScalarGridSpec(
            num_scalar_prefetch=0,
            grid=(B, Pp // tm),
            in_specs=[
                pl.BlockSpec((None, C_in, tm), lambda b, j: (b, 0, j)),   # x
                pl.BlockSpec((c_feat, C_in), lambda b, j: (0, 0)),        # WT
                pl.BlockSpec((c_feat, 1), lambda b, j: (0, 0)),           # b
                pl.BlockSpec((n_out, c_feat), lambda b, j: (0, 0)),       # WfT
                pl.BlockSpec((n_out, 1), lambda b, j: (0, 0)),            # bf
            ],
            out_specs=pl.BlockSpec((None, n_out, tm), lambda b, j: (b, 0, j)),
        ),
        compiler_params=_compiler_params(),
        cost_estimate=pl.CostEstimate(flops=flops, transcendentals=0,
                                      bytes_accessed=bytes_accessed),
    )(x3, w, b, wf, bf)

    return _heads_from_out(out, P, H, W, n_cls)


# ----------------------------------------------------------------------------
# ModelAgnosticBase forward (routing identical to the PyTorch module).
# ----------------------------------------------------------------------------
def model_agnostic_forward(data_dict, params, train_agent_ID):
    pairwise_t_matrix = data_dict["ego"]["pairwise_t_matrix"]
    if train_agent_ID in (-4, -2, -1, -3):
        # torch.no_grad() branches differ only in gradient flow; forward values
        # are identical across -4 / -2 / -1 / -3.
        xv = data_dict[0]["image_inputs"]
        xi = data_dict[1]["image_inputs"]
        return fused_two_agent_forward(
            xv, xi, params["model_v"], params["model_i"], params["model_fusion"])
    elif train_agent_ID == 0:
        xv = data_dict[0]["image_inputs"]
        _ = pairwise_t_matrix[:, 0:1, 0:1]   # single-agent transform (identity)
        return fused_single_agent_forward(
            xv, params["model_v"], params["model_fusion_single"])
    elif train_agent_ID == 1:
        xi = data_dict[1]["image_inputs"]
        return fused_single_agent_forward(
            xi, params["model_i"], params["model_i_head"])
    else:
        raise ValueError("Please configure more agents!")


# ----------------------------------------------------------------------------
# Deterministic parameter construction + plain-JAX f32 references.
# ----------------------------------------------------------------------------
def build_params(key, c_in, c_feat, n_anchors):
    n_cls = n_anchors          # psm channels
    n_reg = 7 * n_anchors      # rm channels (7-dof boxes)
    ks = jax.random.split(key, 8)

    def lin(kw, kb, k_in, k_out):
        w = jax.random.normal(kw, (k_in, k_out), jnp.float32) * 0.1
        b = jax.random.normal(kb, (k_out,), jnp.float32) * 0.01
        return {"w": w, "b": b}

    params = {
        "model_v": lin(ks[0], ks[1], c_in, c_feat),
        "model_i": lin(ks[2], ks[3], c_in, c_feat),
        "model_fusion": {**lin(ks[4], ks[5], 2 * c_feat, n_cls + n_reg),
                         "n_cls": n_cls, "n_reg": n_reg},
        "model_fusion_single": {**lin(ks[6], ks[7], c_feat, n_cls + n_reg),
                                "n_cls": n_cls, "n_reg": n_reg},
    }
    params["model_i_head"] = params["model_fusion_single"]
    return params


def _ref_heads_nchw(heads_flat, B, H, W, n_cls):
    heads = jnp.transpose(heads_flat.reshape(B, H, W, -1), (0, 3, 1, 2))
    return {"psm": heads[:, :n_cls], "rm": heads[:, n_cls:]}


def reference_two_agent(x_v, x_i, params):
    def enc(x, p):
        B, C, H, W = x.shape
        x2 = jnp.transpose(x, (0, 2, 3, 1)).reshape(B * H * W, C)
        return jnp.maximum(x2 @ p["w"] + p["b"], 0.0), (B, H, W)

    hv, (B, H, W) = enc(x_v, params["model_v"])
    hi, _ = enc(x_i, params["model_i"])
    pf = params["model_fusion"]
    heads = jnp.concatenate([hv, hi], axis=-1) @ pf["w"] + pf["b"]
    return _ref_heads_nchw(heads, B, H, W, pf["n_cls"])


def reference_single_agent(x, p_enc, p_head):
    B, C, H, W = x.shape
    x2 = jnp.transpose(x, (0, 2, 3, 1)).reshape(B * H * W, C)
    h = jnp.maximum(x2 @ p_enc["w"] + p_enc["b"], 0.0)
    heads = h @ p_head["w"] + p_head["b"]
    return _ref_heads_nchw(heads, B, H, W, p_head["n_cls"])


# ----------------------------------------------------------------------------
if __name__ == "__main__":
    key = jax.random.PRNGKey(0)
    k_v, k_i, k_p = jax.random.split(key, 3)

    B, C, H, W = 2, 4, 16, 16     # small NCHW inputs per agent
    L = 2                          # number of agents
    C_FEAT = 32
    N_ANCHORS = 2

    x_v = jax.random.normal(k_v, (B, C, H, W), jnp.float32)
    x_i = jax.random.normal(k_i, (B, C, H, W), jnp.float32)
    pairwise_t_matrix = jnp.broadcast_to(jnp.eye(4, dtype=jnp.float32),
                                         (B, L, L, 4, 4))

    data_dict = {
        0: {"image_inputs": x_v},
        1: {"image_inputs": x_i},
        "ego": {"pairwise_t_matrix": pairwise_t_matrix},
    }

    params = build_params(k_p, C, C_FEAT, N_ANCHORS)

    # --- two-agent fused path (train_agent_ID = -2) ---
    out = model_agnostic_forward(data_dict, params, train_agent_ID=-2)
    jax.block_until_ready(out["psm"])
    jax.block_until_ready(out["rm"])
    assert out["psm"].shape == (B, N_ANCHORS, H, W)
    assert out["rm"].shape == (B, 7 * N_ANCHORS, H, W)

    ref = reference_two_agent(x_v, x_i, params)
    err = max(float(jnp.max(jnp.abs(out["psm"].astype(jnp.float32) - ref["psm"]))),
              float(jnp.max(jnp.abs(out["rm"].astype(jnp.float32) - ref["rm"]))))
    assert err < 5e-2, f"two-agent mismatch vs reference: {err}"

    # --- single-agent fused path (train_agent_ID = 0) ---
    out0 = model_agnostic_forward(data_dict, params, train_agent_ID=0)
    jax.block_until_ready(out0["psm"])
    assert out0["psm"].shape == (B, N_ANCHORS, H, W)
    assert out0["rm"].shape == (B, 7 * N_ANCHORS, H, W)
    ref0 = reference_single_agent(x_v, params["model_v"],
                                  params["model_fusion_single"])
    err0 = max(float(jnp.max(jnp.abs(out0["psm"].astype(jnp.float32) - ref0["psm"]))),
               float(jnp.max(jnp.abs(out0["rm"].astype(jnp.float32) - ref0["rm"]))))
    assert err0 < 5e-2, f"single-agent mismatch vs reference: {err0}"

    print("KERNEL_OK")
</pallas_src>

<mosaic_0001>
module attributes {stable_mosaic.version = 11 : i64} {
  func.func @_fused_two_agent_kernel(%arg0: i32, %arg1: i32, %arg2: memref<1x4x256xf32, #tpu.memory_space<vmem>>, %arg3: memref<1x4x256xf32, #tpu.memory_space<vmem>>, %arg4: memref<32x4xbf16, #tpu.memory_space<vmem>>, %arg5: memref<32x1xf32, #tpu.memory_space<vmem>>, %arg6: memref<32x4xbf16, #tpu.memory_space<vmem>>, %arg7: memref<32x1xf32, #tpu.memory_space<vmem>>, %arg8: memref<16x32xbf16, #tpu.memory_space<vmem>>, %arg9: memref<16x32xbf16, #tpu.memory_space<vmem>>, %arg10: memref<16x1xf32, #tpu.memory_space<vmem>>, %arg11: memref<1x16x256xbf16, #tpu.memory_space<vmem>>) attributes {dimension_semantics = [#tpu.dimension_semantics<parallel>, #tpu.dimension_semantics<parallel>], iteration_bounds = array<i64: 2, 1>, scalar_prefetch = 0 : i64, scratch_operands = 0 : i64, tpu.core_type = #tpu.core_type<tc>, window_params = [{transform_indices = @transform_0, window_bounds = array<i64: 1, 4, 256>}, {transform_indices = @transform_1, window_bounds = array<i64: 1, 4, 256>}, {pipeline_mode = #tpu.pipeline_mode<synchronous>, transform_indices = @transform_2, window_bounds = array<i64: 32, 4>}, {pipeline_mode = #tpu.pipeline_mode<synchronous>, transform_indices = @transform_3, window_bounds = array<i64: 32, 1>}, {pipeline_mode = #tpu.pipeline_mode<synchronous>, transform_indices = @transform_4, window_bounds = array<i64: 32, 4>}, {pipeline_mode = #tpu.pipeline_mode<synchronous>, transform_indices = @transform_5, window_bounds = array<i64: 32, 1>}, {pipeline_mode = #tpu.pipeline_mode<synchronous>, transform_indices = @transform_6, window_bounds = array<i64: 16, 32>}, {pipeline_mode = #tpu.pipeline_mode<synchronous>, transform_indices = @transform_7, window_bounds = array<i64: 16, 32>}, {pipeline_mode = #tpu.pipeline_mode<synchronous>, transform_indices = @transform_8, window_bounds = array<i64: 16, 1>}, {transform_indices = @transform_9, window_bounds = array<i64: 1, 16, 256>}]} {
    %c0 = arith.constant 0 : index
    %c0_0 = arith.constant 0 : index
    %c0_1 = arith.constant 0 : index
    %0 = vector.load %arg2[%c0, %c0_0, %c0_1] : memref<1x4x256xf32, #tpu.memory_space<vmem>>, vector<1x4x256xf32>
    %1 = vector.shape_cast %0 : vector<1x4x256xf32> to vector<4x256xf32>
    %2 = arith.truncf %1 : vector<4x256xf32> to vector<4x256xbf16>
    %c0_2 = arith.constant 0 : index
    %c0_3 = arith.constant 0 : index
    %c0_4 = arith.constant 0 : index
    %3 = vector.load %arg3[%c0_2, %c0_3, %c0_4] : memref<1x4x256xf32, #tpu.memory_space<vmem>>, vector<1x4x256xf32>
    %4 = vector.shape_cast %3 : vector<1x4x256xf32> to vector<4x256xf32>
    %5 = arith.truncf %4 : vector<4x256xf32> to vector<4x256xbf16>
    %c0_5 = arith.constant 0 : index
    %c0_6 = arith.constant 0 : index
    %6 = vector.load %arg4[%c0_5, %c0_6] : memref<32x4xbf16, #tpu.memory_space<vmem>>, vector<32x4xbf16>
    %cst = arith.constant dense<0.000000e+00> : vector<32x256xf32>
    %7 = tpu.matmul %6, %2, %cst {dimension_numbers = #tpu.dot_dimension_numbers<[1], [0], [0], [1], [0, 0, 1, 1], [], []>} : vector<32x4xbf16>, vector<4x256xbf16>, vector<32x256xf32> -> vector<32x256xf32>
    %c0_7 = arith.constant 0 : index
    %c0_8 = arith.constant 0 : index
    %8 = vector.load %arg5[%c0_7, %c0_8] : memref<32x1xf32, #tpu.memory_space<vmem>>, vector<32x1xf32>
    %9 = vector.broadcast %8 : vector<32x1xf32> to vector<32x256xf32>
    %10 = arith.addf %7, %9 : vector<32x256xf32>
    %cst_9 = arith.constant 0.000000e+00 : f32
    %11 = vector.broadcast %cst_9 : f32 to vector<32x256xf32>
    %12 = arith.maximumf %10, %11 : vector<32x256xf32>
    %13 = arith.truncf %12 : vector<32x256xf32> to vector<32x256xbf16>
    %c0_10 = arith.constant 0 : index
    %c0_11 = arith.constant 0 : index
    %14 = vector.load %arg6[%c0_10, %c0_11] : memref<32x4xbf16, #tpu.memory_space<vmem>>, vector<32x4xbf16>
    %cst_12 = arith.constant dense<0.000000e+00> : vector<32x256xf32>
    %15 = tpu.matmul %14, %5, %cst_12 {dimension_numbers = #tpu.dot_dimension_numbers<[1], [0], [0], [1], [0, 0, 1, 1], [], []>} : vector<32x4xbf16>, vector<4x256xbf16>, vector<32x256xf32> -> vector<32x256xf32>
    %c0_13 = arith.constant 0 : index
    %c0_14 = arith.constant 0 : index
    %16 = vector.load %arg7[%c0_13, %c0_14] : memref<32x1xf32, #tpu.memory_space<vmem>>, vector<32x1xf32>
    %17 = vector.broadcast %16 : vector<32x1xf32> to vector<32x256xf32>
    %18 = arith.addf %15, %17 : vector<32x256xf32>
    %cst_15 = arith.constant 0.000000e+00 : f32
    %19 = vector.broadcast %cst_15 : f32 to vector<32x256xf32>
    %20 = arith.maximumf %18, %19 : vector<32x256xf32>
    %21 = arith.truncf %20 : vector<32x256xf32> to vector<32x256xbf16>
    %c0_16 = arith.constant 0 : index
    %c0_17 = arith.constant 0 : index
    %22 = vector.load %arg8[%c0_16, %c0_17] : memref<16x32xbf16, #tpu.memory_space<vmem>>, vector<16x32xbf16>
    %cst_18 = arith.constant dense<0.000000e+00> : vector<16x256xf32>
    %23 = tpu.matmul %22, %13, %cst_18 {dimension_numbers = #tpu.dot_dimension_numbers<[1], [0], [0], [1], [0, 0, 1, 1], [], []>} : vector<16x32xbf16>, vector<32x256xbf16>, vector<16x256xf32> -> vector<16x256xf32>
    %c0_19 = arith.constant 0 : index
    %c0_20 = arith.constant 0 : index
    %24 = vector.load %arg9[%c0_19, %c0_20] : memref<16x32xbf16, #tpu.memory_space<vmem>>, vector<16x32xbf16>
    %cst_21 = arith.constant dense<0.000000e+00> : vector<16x256xf32>
    %25 = tpu.matmul %24, %21, %cst_21 {dimension_numbers = #tpu.dot_dimension_numbers<[1], [0], [0], [1], [0, 0, 1, 1], [], []>} : vector<16x32xbf16>, vector<32x256xbf16>, vector<16x256xf32> -> vector<16x256xf32>
    %26 = arith.addf %23, %25 : vector<16x256xf32>
    %c0_22 = arith.constant 0 : index
    %c0_23 = arith.constant 0 : index
    %27 = vector.load %arg10[%c0_22, %c0_23] : memref<16x1xf32, #tpu.memory_space<vmem>>, vector<16x1xf32>
    %28 = vector.broadcast %27 : vector<16x1xf32> to vector<16x256xf32>
    %29 = arith.addf %26, %28 : vector<16x256xf32>
    %30 = arith.truncf %29 : vector<16x256xf32> to vector<16x256xbf16>
    %c0_24 = arith.constant 0 : index
    %c0_25 = arith.constant 0 : index
    %c0_26 = arith.constant 0 : index
    %31 = vector.load %arg11[%c0_24, %c0_25, %c0_26] : memref<1x16x256xbf16, #tpu.memory_space<vmem>>, vector<1x16x256xbf16>
    %32 = vector.shape_cast %31 : vector<1x16x256xbf16> to vector<16x256xbf16>
    %33 = vector.shape_cast %30 : vector<16x256xbf16> to vector<1x16x256xbf16>
    tpu.vector_store %arg11[%c0_24, %c0_25, %c0_26], %33 {strides = array<i32>} : memref<1x16x256xbf16, #tpu.memory_space<vmem>>, vector<1x16x256xbf16>,
    return
  }
  func.func @transform_0(%arg0: i32, %arg1: i32) -> (i32, i32, i32) {
    %c0_i32 = arith.constant 0 : i32
    %c0_i32_0 = arith.constant 0 : i32
    return %arg0, %c0_i32, %arg1 : i32, i32, i32
  }
  func.func @transform_1(%arg0: i32, %arg1: i32) -> (i32, i32, i32) {
    %c0_i32 = arith.constant 0 : i32
    %c0_i32_0 = arith.constant 0 : i32
    return %arg0, %c0_i32, %arg1 : i32, i32, i32
  }
  func.func @transform_2(%arg0: i32, %arg1: i32) -> (i32, i32) {
    %c0_i32 = arith.constant 0 : i32
    %c0_i32_0 = arith.constant 0 : i32
    %c0_i32_1 = arith.constant 0 : i32
    return %c0_i32, %c0_i32_0 : i32, i32
  }
  func.func @transform_3(%arg0: i32, %arg1: i32) -> (i32, i32) {
    %c0_i32 = arith.constant 0 : i32
    %c0_i32_0 = arith.constant 0 : i32
    %c0_i32_1 = arith.constant 0 : i32
    return %c0_i32, %c0_i32_0 : i32, i32
  }
  func.func @transform_4(%arg0: i32, %arg1: i32) -> (i32, i32) {
    %c0_i32 = arith.constant 0 : i32
    %c0_i32_0 = arith.constant 0 : i32
    %c0_i32_1 = arith.constant 0 : i32
    return %c0_i32, %c0_i32_0 : i32, i32
  }
  func.func @transform_5(%arg0: i32, %arg1: i32) -> (i32, i32) {
    %c0_i32 = arith.constant 0 : i32
    %c0_i32_0 = arith.constant 0 : i32
    %c0_i32_1 = arith.constant 0 : i32
    return %c0_i32, %c0_i32_0 : i32, i32
  }
  func.func @transform_6(%arg0: i32, %arg1: i32) -> (i32, i32) {
    %c0_i32 = arith.constant 0 : i32
    %c0_i32_0 = arith.constant 0 : i32
    %c0_i32_1 = arith.constant 0 : i32
    return %c0_i32, %c0_i32_0 : i32, i32
  }
  func.func @transform_7(%arg0: i32, %arg1: i32) -> (i32, i32) {
    %c0_i32 = arith.constant 0 : i32
    %c0_i32_0 = arith.constant 0 : i32
    %c0_i32_1 = arith.constant 0 : i32
    return %c0_i32, %c0_i32_0 : i32, i32
  }
  func.func @transform_8(%arg0: i32, %arg1: i32) -> (i32, i32) {
    %c0_i32 = arith.constant 0 : i32
    %c0_i32_0 = arith.constant 0 : i32
    %c0_i32_1 = arith.constant 0 : i32
    return %c0_i32, %c0_i32_0 : i32, i32
  }
  func.func @transform_9(%arg0: i32, %arg1: i32) -> (i32, i32, i32) {
    %c0_i32 = arith.constant 0 : i32
    %c0_i32_0 = arith.constant 0 : i32
    return %arg0, %c0_i32, %arg1 : i32, i32, i32
  }
}

</mosaic_0001>

<llo_original>
// kernel: tpu_custom_call.1
$region0: #{tpu_custom_call.1}
  #allocation0 [shape = 'u32[]', space=smem, size = 0x4, offset = 0x4, fixed_abs, tag = 'smem constant byte address 0x4 - core index']
  #allocation1 [shape = 'u32[144,128]{1,0:T(1,128)}', space=vmem, size = 0x12000, scoped, tag = 'internal scratch']
  %s0 = inlined_call_operand.vmem [shape: f32[2,4,256], index: 0, kind: input, shape index: {}]
  %s1 = inlined_call_operand.vmem [shape: f32[2,4,256], index: 1, kind: input, shape index: {}]
  %s2 = inlined_call_operand.vmem [shape: bf16[32,4], index: 2, kind: input, shape index: {}]
  %s3 = inlined_call_operand.vmem [shape: f32[32,1], index: 3, kind: input, shape index: {}]
  %s4 = inlined_call_operand.vmem [shape: bf16[32,4], index: 4, kind: input, shape index: {}]
  %s5 = inlined_call_operand.vmem [shape: f32[32,1], index: 5, kind: input, shape index: {}]
  %s6 = inlined_call_operand.vmem [shape: bf16[16,32], index: 6, kind: input, shape index: {}]
  %s7 = inlined_call_operand.vmem [shape: bf16[16,32], index: 7, kind: input, shape index: {}]
  %s8 = inlined_call_operand.vmem [shape: f32[16,1], index: 8, kind: input, shape index: {}]
  %s9 = inlined_call_operand.hbm [shape: bf16[2,16,256], index: 9, kind: output, shape index: {}]
  %s10 = sld [smem:[#allocation0]]
  $region69: #{tpu_custom_call.1} parent=0
    _
  %s12 = ssub.s32 1, %s10
  %s13 = scalar_select 0, %s12, %s10
  $region1: #{tpu_custom_call.1} parent=0
    #allocation2 [shape = 'u8[16384]{0}', space=vmem, size = 0x4000, scoped, tag = 'output window, operand 0']
    #allocation3 [shape = 's32[2]{0}', space=sflag, size = 0x8, scoped, tag = 'scoped memory for tpu_custom_call.1']
    %14 = vsyncpa [#allocation3], 0
    %s15 = scalar_lea.sflag [#allocation3], 1
    %16 = vsyncpa %s15, 0
    loop: start=0, step=1, limit=4
    $region2: #{tpu_custom_call.1} parent=1 // loop_pre_header
      _
    $region3: #{tpu_custom_call.1} parent=1 // loop_header
      %s18 = sphi 0, %s22
      %p19 = scmp.ge.s32.totalorder %s18, 4
      %s25 = sphi 0, %s37
      %s26 = sphi 0, %s33
      %s27 = sphi 0, %s25
      %s28 = sphi 0, %s26
      %s29 = sphi 0, %s27
      %s30 = sphi 0, %s28
      %s42 = sphi 0, %s44
      %s45 = sphi 0, %s42
      %s46 = sphi 0, %s45
      %s62 = sphi 0, %s46
      %s70 = sphi 0, %s72
      %s73 = sphi 0, %s70
      %s74 = sphi 0, %s73
      %s90 = sphi 0, %s74
      %s94 = sphi 0, %s94
      %s96 = sphi 0, %s94
      %s97 = sphi 0, %s96
      %s111 = sphi 0, %s97
      %s115 = sphi 0, %s115
      %s117 = sphi 0, %s115
      %s118 = sphi 0, %s117
      %s132 = sphi 0, %s118
      %s136 = sphi 0, %s136
      %s138 = sphi 0, %s136
      %s139 = sphi 0, %s138
      %s153 = sphi 0, %s139
      %s157 = sphi 0, %s157
      %s159 = sphi 0, %s157
      %s160 = sphi 0, %s159
      %s174 = sphi 0, %s160
      %s178 = sphi 0, %s178
      %s180 = sphi 0, %s178
      %s181 = sphi 0, %s180
      %s195 = sphi 0, %s181
      %s199 = sphi 0, %s199
      %s201 = sphi 0, %s199
      %s202 = sphi 0, %s201
      %s216 = sphi 0, %s202
      %s220 = sphi 0, %s220
      %s222 = sphi 0, %s220
      %s223 = sphi 0, %s222
      %s237 = sphi 0, %s223
      %s245 = sphi 0, %s247
      %s248 = sphi 0, %s245
      %s249 = sphi 0, %s248
      %s265 = sphi 0, %s249
    $region4: #{tpu_custom_call.1} parent=1 // loop_header_branch
      %21 = sbr.rel (%p19) target = $region8
    $region5: #{tpu_custom_call.1} parent=1 // loop_body
      %s23 = ssub.s32 %s18, 1
      %s24 = ssub.s32 %s18, 2
      %s31 = sadd.s32 1, %s26
      %p32 = scmp.ge.s32.totalorder %s31, 1
      %s33 = scalar_select %p32, 0, %s31
      %s34 = sadd.s32 1, %s25
      %s35 = scalar_select %p32, %s34, %s25
      %p36 = scmp.ge.s32.totalorder %s35, 2
      %s37 = scalar_select %p36, 0, %s35
      %s38 = ssub.s32 %s25, %s37
      %s39 = ssub.s32 %s26, %s33
      %s40 = sor.u32 %s38, %s39
      %p41 = scmp.eq.s32.totalorder %s40, 0
      %s43 = sadd.s32 %s42, 1
      %s44 = scalar_select %p41, %s42, %s43
      %p47 = pneg %p41
      %p48 = scmp.eq.s32.totalorder %s18, 1
      %p49 = por %p47, %p48
      %p50 = scmp.ne.s32.totalorder %s42, %s45
      %p51 = scmp.eq.s32.totalorder %s18, 0
      %p52 = por %p50, %p51
      %p53 = scmp.ne.s32.totalorder %s42, %s45
      %p54 = scmp.eq.s32.totalorder %s23, 1
      %p55 = por %p53, %p54
      %p56 = scmp.ne.s32.totalorder %s45, %s46
      %p57 = scmp.eq.s32.totalorder %s23, 0
      %p58 = por %p56, %p57
      %p59 = scmp.ne.s32.totalorder %s45, %s46
      %p60 = scmp.eq.s32.totalorder %s24, 1
      %p61 = por %p59, %p60
      %p63 = scmp.ne.s32.totalorder %s46, %s62
      %p64 = scmp.eq.s32.totalorder %s24, 0
      %p65 = por %p63, %p64
      %s66 = ssub.s32 %s25, %s37
      %s67 = ssub.s32 %s26, %s33
      %s68 = sor.u32 %s66, %s67
      %p69 = scmp.eq.s32.totalorder %s68, 0
      %s71 = sadd.s32 %s70, 1
      %s72 = scalar_select %p69, %s70, %s71
      %p75 = pneg %p69
      %p76 = scmp.eq.s32.totalorder %s18, 1
      %p77 = por %p75, %p76
      %p78 = scmp.ne.s32.totalorder %s70, %s73
      %p79 = scmp.eq.s32.totalorder %s18, 0
      %p80 = por %p78, %p79
      %p81 = scmp.ne.s32.totalorder %s70, %s73
      %p82 = scmp.eq.s32.totalorder %s23, 1
      %p83 = por %p81, %p82
      %p84 = scmp.ne.s32.totalorder %s73, %s74
      %p85 = scmp.eq.s32.totalorder %s23, 0
      %p86 = por %p84, %p85
      %p87 = scmp.ne.s32.totalorder %s73, %s74
      %p88 = scmp.eq.s32.totalorder %s24, 1
      %p89 = por %p87, %p88
      %p91 = scmp.ne.s32.totalorder %s74, %s90
      %p92 = scmp.eq.s32.totalorder %s24, 0
      %p93 = por %p91, %p92
      %s95 = sadd.s32 %s94, 1
      %p98 = scmp.eq.s32.totalorder %s18, 1
      %p99 = scmp.ne.s32.totalorder %s94, %s96
      %p100 = scmp.eq.s32.totalorder %s18, 0
      %p101 = por %p99, %p100
      %p102 = scmp.ne.s32.totalorder %s94, %s96
      %p103 = scmp.eq.s32.totalorder %s23, 1
      %p104 = por %p102, %p103
      %p105 = scmp.ne.s32.totalorder %s96, %s97
      %p106 = scmp.eq.s32.totalorder %s23, 0
      %p107 = por %p105, %p106
      %p108 = scmp.ne.s32.totalorder %s96, %s97
      %p109 = scmp.eq.s32.totalorder %s24, 1
      %p110 = por %p108, %p109
      %p112 = scmp.ne.s32.totalorder %s97, %s111
      %p113 = scmp.eq.s32.totalorder %s24, 0
      %p114 = por %p112, %p113
      %s116 = sadd.s32 %s115, 1
      %p119 = scmp.eq.s32.totalorder %s18, 1
      %p120 = scmp.ne.s32.totalorder %s115, %s117
      %p121 = scmp.eq.s32.totalorder %s18, 0
      %p122 = por %p120, %p121
      %p123 = scmp.ne.s32.totalorder %s115, %s117
      %p124 = scmp.eq.s32.totalorder %s23, 1
      %p125 = por %p123, %p124
      %p126 = scmp.ne.s32.totalorder %s117, %s118
      %p127 = scmp.eq.s32.totalorder %s23, 0
      %p128 = por %p126, %p127
      %p129 = scmp.ne.s32.totalorder %s117, %s118
      %p130 = scmp.eq.s32.totalorder %s24, 1
      %p131 = por %p129, %p130
      %p133 = scmp.ne.s32.totalorder %s118, %s132
      %p134 = scmp.eq.s32.totalorder %s24, 0
      %p135 = por %p133, %p134
      %s137 = sadd.s32 %s136, 1
      %p140 = scmp.eq.s32.totalorder %s18, 1
      %p141 = scmp.ne.s32.totalorder %s136, %s138
      %p142 = scmp.eq.s32.totalorder %s18, 0
      %p143 = por %p141, %p142
      %p144 = scmp.ne.s32.totalorder %s136, %s138
      %p145 = scmp.eq.s32.totalorder %s23, 1
      %p146 = por %p144, %p145
      %p147 = scmp.ne.s32.totalorder %s138, %s139
      %p148 = scmp.eq.s32.totalorder %s23, 0
      %p149 = por %p147, %p148
      %p150 = scmp.ne.s32.totalorder %s138, %s139
      %p151 = scmp.eq.s32.totalorder %s24, 1
      %p152 = por %p150, %p151
      %p154 = scmp.ne.s32.totalorder %s139, %s153
      %p155 = scmp.eq.s32.totalorder %s24, 0
      %p156 = por %p154, %p155
      %s158 = sadd.s32 %s157, 1
      %p161 = scmp.eq.s32.totalorder %s18, 1
      %p162 = scmp.ne.s32.totalorder %s157, %s159
      %p163 = scmp.eq.s32.totalorder %s18, 0
      %p164 = por %p162, %p163
      %p165 = scmp.ne.s32.totalorder %s157, %s159
      %p166 = scmp.eq.s32.totalorder %s23, 1
      %p167 = por %p165, %p166
      %p168 = scmp.ne.s32.totalorder %s159, %s160
      %p169 = scmp.eq.s32.totalorder %s23, 0
      %p170 = por %p168, %p169
      %p171 = scmp.ne.s32.totalorder %s159, %s160
      %p172 = scmp.eq.s32.totalorder %s24, 1
      %p173 = por %p171, %p172
      %p175 = scmp.ne.s32.totalorder %s160, %s174
      %p176 = scmp.eq.s32.totalorder %s24, 0
      %p177 = por %p175, %p176
      %s179 = sadd.s32 %s178, 1
      %p182 = scmp.eq.s32.totalorder %s18, 1
      %p183 = scmp.ne.s32.totalorder %s178, %s180
      %p184 = scmp.eq.s32.totalorder %s18, 0
      %p185 = por %p183, %p184
      %p186 = scmp.ne.s32.totalorder %s178, %s180
      %p187 = scmp.eq.s32.totalorder %s23, 1
      %p188 = por %p186, %p187
      %p189 = scmp.ne.s32.totalorder %s180, %s181
      %p190 = scmp.eq.s32.totalorder %s23, 0
      %p191 = por %p189, %p190
      %p192 = scmp.ne.s32.totalorder %s180, %s181
      %p193 = scmp.eq.s32.totalorder %s24, 1
      %p194 = por %p192, %p193
      %p196 = scmp.ne.s32.totalorder %s181, %s195
      %p197 = scmp.eq.s32.totalorder %s24, 0
      %p198 = por %p196, %p197
      %s200 = sadd.s32 %s199, 1
      %p203 = scmp.eq.s32.totalorder %s18, 1
      %p204 = scmp.ne.s32.totalorder %s199, %s201
      %p205 = scmp.eq.s32.totalorder %s18, 0
      %p206 = por %p204, %p205
      %p207 = scmp.ne.s32.totalorder %s199, %s201
      %p208 = scmp.eq.s32.totalorder %s23, 1
      %p209 = por %p207, %p208
      %p210 = scmp.ne.s32.totalorder %s201, %s202
      %p211 = scmp.eq.s32.totalorder %s23, 0
      %p212 = por %p210, %p211
      %p213 = scmp.ne.s32.totalorder %s201, %s202
      %p214 = scmp.eq.s32.totalorder %s24, 1
      %p215 = por %p213, %p214
      %p217 = scmp.ne.s32.totalorder %s202, %s216
      %p218 = scmp.eq.s32.totalorder %s24, 0
      %p219 = por %p217, %p218
      %s221 = sadd.s32 %s220, 1
      %p224 = scmp.eq.s32.totalorder %s18, 1
      %p225 = scmp.ne.s32.totalorder %s220, %s222
      %p226 = scmp.eq.s32.totalorder %s18, 0
      %p227 = por %p225, %p226
      %p228 = scmp.ne.s32.totalorder %s220, %s222
      %p229 = scmp.eq.s32.totalorder %s23, 1
      %p230 = por %p228, %p229
      %p231 = scmp.ne.s32.totalorder %s222, %s223
      %p232 = scmp.eq.s32.totalorder %s23, 0
      %p233 = por %p231, %p232
      %p234 = scmp.ne.s32.totalorder %s222, %s223
      %p235 = scmp.eq.s32.totalorder %s24, 1
      %p236 = por %p234, %p235
      %p238 = scmp.ne.s32.totalorder %s223, %s237
      %p239 = scmp.eq.s32.totalorder %s24, 0
      %p240 = por %p238, %p239
      %s241 = ssub.s32 %s25, %s37
      %s242 = ssub.s32 %s26, %s33
      %s243 = sor.u32 %s241, %s242
      %p244 = scmp.eq.s32.totalorder %s243, 0
      %s246 = sadd.s32 %s245, 1
      %s247 = scalar_select %p244, %s245, %s246
      %p250 = pneg %p244
      %p251 = scmp.eq.s32.totalorder %s18, 1
      %p252 = por %p250, %p251
      %p253 = scmp.ne.s32.totalorder %s245, %s248
      %p254 = scmp.eq.s32.totalorder %s18, 0
      %p255 = por %p253, %p254
      %p256 = scmp.ne.s32.totalorder %s245, %s248
      %p257 = scmp.eq.s32.totalorder %s23, 1
      %p258 = por %p256, %p257
      %p259 = scmp.ne.s32.totalorder %s248, %s249
      %p260 = scmp.eq.s32.totalorder %s23, 0
      %p261 = por %p259, %p260
      %p262 = scmp.ne.s32.totalorder %s248, %s249
      %p263 = scmp.eq.s32.totalorder %s24, 1
      %p264 = por %p262, %p263
      %p266 = scmp.ne.s32.totalorder %s249, %s265
      %p267 = scmp.eq.s32.totalorder %s24, 0
      %p268 = por %p266, %p267
      %p269 = scmp.le.s32.totalorder 1, %s18
      %p270 = scmp.lt.s32.totalorder %s18, 3
      %p271 = pnand %p269, %p270
      %p272 = pneg %p271
      // Predicated region
      $region9: #{tpu_custom_call.1} parent=5 // pred_check
        _
      $region10: #{tpu_custom_call.1} parent=5 // pred_check_branch
        %274 = sbr.rel (%p271) target = $region12
      $region11: #{tpu_custom_call.1} parent=5 // pred_region
        %s275 = ssub.s32 %s18, 1
        // Predicated region
        $region13: #{tpu_custom_call.1} parent=11 // pred_check
          %p276 = pneg %p107
        $region14: #{tpu_custom_call.1} parent=11 // pred_check_branch
          %278 = sbr.rel (%p276) target = $region16
        $region15: #{tpu_custom_call.1} parent=11 // pred_region
          _
        $region16: #{tpu_custom_call.1} parent=11 // pred_fallthru
          _
        // Predicated region
        $region17: #{tpu_custom_call.1} parent=11 // pred_check
          %p279 = pneg %p128
        $region18: #{tpu_custom_call.1} parent=11 // pred_check_branch
          %281 = sbr.rel (%p279) target = $region20
        $region19: #{tpu_custom_call.1} parent=11 // pred_region
          _
        $region20: #{tpu_custom_call.1} parent=11 // pred_fallthru
          _
        // Predicated region
        $region21: #{tpu_custom_call.1} parent=11 // pred_check
          %p282 = pneg %p149
        $region22: #{tpu_custom_call.1} parent=11 // pred_check_branch
          %284 = sbr.rel (%p282) target = $region24
        $region23: #{tpu_custom_call.1} parent=11 // pred_region
          _
        $region24: #{tpu_custom_call.1} parent=11 // pred_fallthru
          _
        // Predicated region
        $region25: #{tpu_custom_call.1} parent=11 // pred_check
          %p285 = pneg %p170
        $region26: #{tpu_custom_call.1} parent=11 // pred_check_branch
          %287 = sbr.rel (%p285) target = $region28
        $region27: #{tpu_custom_call.1} parent=11 // pred_region
          _
        $region28: #{tpu_custom_call.1} parent=11 // pred_fallthru
          _
        // Predicated region
        $region29: #{tpu_custom_call.1} parent=11 // pred_check
          %p288 = pneg %p191
        $region30: #{tpu_custom_call.1} parent=11 // pred_check_branch
          %290 = sbr.rel (%p288) target = $region32
        $region31: #{tpu_custom_call.1} parent=11 // pred_region
          _
        $region32: #{tpu_custom_call.1} parent=11 // pred_fallthru
          _
        // Predicated region
        $region33: #{tpu_custom_call.1} parent=11 // pred_check
          %p291 = pneg %p212
        $region34: #{tpu_custom_call.1} parent=11 // pred_check_branch
          %293 = sbr.rel (%p291) target = $region36
        $region35: #{tpu_custom_call.1} parent=11 // pred_region
          _
        $region36: #{tpu_custom_call.1} parent=11 // pred_fallthru
          _
        // Predicated region
        $region37: #{tpu_custom_call.1} parent=11 // pred_check
          %p294 = pneg %p233
        $region38: #{tpu_custom_call.1} parent=11 // pred_check_branch
          %296 = sbr.rel (%p294) target = $region40
        $region39: #{tpu_custom_call.1} parent=11 // pred_region
          _
        $region40: #{tpu_custom_call.1} parent=11 // pred_fallthru
          _
      $region12: #{tpu_custom_call.1} parent=5 // pred_fallthru
        _
      %p297 = scmp.lt.s32.totalorder %s18, 2
      // Predicated region
      $region41: #{tpu_custom_call.1} parent=5 // pred_check
        %p298 = pneg %p297
      $region42: #{tpu_custom_call.1} parent=5 // pred_check_branch
        %300 = sbr.rel (%p298) target = $region44
      $region43: #{tpu_custom_call.1} parent=5 // pred_region
        // Predicated region
        $region45: #{tpu_custom_call.1} parent=43 // pred_check
          %p301 = pneg %p52
        $region46: #{tpu_custom_call.1} parent=43 // pred_check_branch
          %303 = sbr.rel (%p301) target = $region48
        $region47: #{tpu_custom_call.1} parent=43 // pred_region
          %s304 = smul.u32 2, %s26
          %p305 = scmp.lt.s32.totalorder %s25, 1
          %s306 = scalar_select %p305, %s25, 1
          %p307 = scmp.lt.s32.totalorder %s304, 1
          %s308 = scalar_select %p307, %s304, 1
          %s309 = smul.addr %s306, 2
          %s310 = sadd.s32 %s308, %s309
          %s311 = smul.addr %s310, 4
          %s312 = scalar_lea.vmem %s0, %s311
          %s313 = smul.u32 2, %s26
        $region48: #{tpu_custom_call.1} parent=43 // pred_fallthru
          _
        // Predicated region
        $region49: #{tpu_custom_call.1} parent=43 // pred_check
          %p314 = pneg %p80
        $region50: #{tpu_custom_call.1} parent=43 // pred_check_branch
          %316 = sbr.rel (%p314) target = $region52
        $region51: #{tpu_custom_call.1} parent=43 // pred_region
          %s317 = smul.u32 2, %s26
          %p318 = scmp.lt.s32.totalorder %s25, 1
          %s319 = scalar_select %p318, %s25, 1
          %p320 = scmp.lt.s32.totalorder %s317, 1
          %s321 = scalar_select %p320, %s317, 1
          %s322 = smul.addr %s319, 2
          %s323 = sadd.s32 %s321, %s322
          %s324 = smul.addr %s323, 4
          %s325 = scalar_lea.vmem %s1, %s324
          %s326 = smul.u32 2, %s26
        $region52: #{tpu_custom_call.1} parent=43 // pred_fallthru
          _
      $region44: #{tpu_custom_call.1} parent=5 // pred_fallthru
        _
      %p327 = scmp.le.s32.totalorder 1, %s18
      %p328 = scmp.lt.s32.totalorder %s18, 3
      %p329 = pnand %p327, %p328
      %p330 = pneg %p329
      // Predicated region
      $region53: #{tpu_custom_call.1} parent=5 // pred_check
        _
      $region54: #{tpu_custom_call.1} parent=5 // pred_check_branch
        %332 = sbr.rel (%p329) target = $region56
      $region55: #{tpu_custom_call.1} parent=5 // pred_region
        %s333 = ssub.s32 %s18, 1
        %s334 = smul.u32 2, %s28
        %p335 = scmp.lt.s32.totalorder %s27, 1
        %s336 = scalar_select %p335, %s27, 1
        %p337 = scmp.lt.s32.totalorder %s334, 1
        %s338 = scalar_select %p337, %s334, 1
        %s339 = smul.addr %s336, 2
        %s340 = sadd.s32 %s338, %s339
        %s341 = smul.addr %s340, 4
        %s342 = scalar_lea.vmem %s0, %s341
        %p343 = pneg %p58
        %p344 = pneg %p55
        %s345 = smul.u32 2, %s28
        %p346 = scmp.lt.s32.totalorder %s27, 1
        %s347 = scalar_select %p346, %s27, 1
        %p348 = scmp.lt.s32.totalorder %s345, 1
        %s349 = scalar_select %p348, %s345, 1
        %s350 = smul.addr %s347, 2
        %s351 = sadd.s32 %s349, %s350
        %s352 = smul.addr %s351, 4
        %s353 = scalar_lea.vmem %s1, %s352
        %p354 = pneg %p86
        %p355 = pneg %p83
        %p356 = pneg %p107
        %p357 = pneg %p104
        %p358 = pneg %p128
        %p359 = pneg %p125
        %p360 = pneg %p149
        %p361 = pneg %p146
        %p362 = pneg %p170
        %p363 = pneg %p167
        %p364 = pneg %p191
        %p365 = pneg %p188
        %p366 = pneg %p212
        %p367 = pneg %p209
        %p368 = pneg %p233
        %p369 = pneg %p230
        %p370 = pneg %p261
        %p371 = pneg %p258
        %s372 = sand.u32 %s248, 1
        %s373 = scalar_lea.sflag [#allocation3], %s372
        %s374 = sand.u32 %s248, 1
        %s375 = smul.addr %s374, 16
        %s376 = scalar_lea.vmem [#allocation2], %s375
        %s377 = smul.u32 2, %s28
        %p378 = scmp.lt.s32.totalorder %s27, 1
        %s379 = scalar_select %p378, %s27, 1
        %p380 = scmp.lt.s32.totalorder %s377, 1
        %s381 = scalar_select %p380, %s377, 1
        %s382 = smul.addr %s379, 2
        %s383 = sadd.s32 %s381, %s382
        %s384 = smul.addr %s383, 4
        %s385 = scalar_lea.vmem %s0, %s384
        %s386 = smul.u32 2, %s28
        %s387 = smul.u32 2, %s28
        %p388 = scmp.lt.s32.totalorder %s27, 1
        %s389 = scalar_select %p388, %s27, 1
        %p390 = scmp.lt.s32.totalorder %s387, 1
        %s391 = scalar_select %p390, %s387, 1
        %s392 = smul.addr %s389, 2
        %s393 = sadd.s32 %s391, %s392
        %s394 = smul.addr %s393, 4
        %s395 = scalar_lea.vmem %s1, %s394
        %s396 = smul.u32 2, %s28
        %s397 = smul.u32 2, %s28
        %v399 = vld [vmem:[%s385] sm:$0xff]
        %v401 = vcombine.high %v399, %v399
        %v403 = vpack.c.bf16 %v399, %v399
        %v404 = vpack.c.bf16 %v401, %v401
        %v405 = vld [vmem:[%s395] sm:$0xff]
        %v407 = vcombine.high %v405, %v405
        %v409 = vpack.c.bf16 %v405, %v405
        %v410 = vpack.c.bf16 %v407, %v407
        %v411 = vld [vmem:[%s2] sm:$0xf]
        %v412 = vld [vmem:[%s2 + $0x4] sm:$0xf]
        %v413 = vld [vmem:[%s2 + $0x8] sm:$0xf]
        %v414 = vld [vmem:[%s2 + $0xc] sm:$0xf]
        %v415 = vld [vmem:[%s3] sm:$0xff]
        %v416 = vld [vmem:[%s3 + $0x8] sm:$0xff]
        %v417 = vld [vmem:[%s3 + $0x10] sm:$0xff]
        %v418 = vld [vmem:[%s3 + $0x18] sm:$0xff]
        %420 = vset.pattern.permute.xlu0 0
        %421 = vperm.xlu0 %420, %v415
        %v422 = vpop.permute.xlu0 %421
        %425 = vset.pattern.permute.xlu0 0
        %426 = vperm.xlu0 %425, %v416
        %v427 = vpop.permute.xlu0 %426
        %430 = vset.pattern.permute.xlu0 0
        %431 = vperm.xlu0 %430, %v417
        %v432 = vpop.permute.xlu0 %431
        %435 = vset.pattern.permute.xlu0 0
        %436 = vperm.xlu0 %435, %v418
        %v437 = vpop.permute.xlu0 %436
        %v443 = vunpack.c.l.b16 %v411
        %v444 = vunpack.c.l.b16 %v412
        %v445 = vunpack.c.l.b16 %v413
        %v446 = vunpack.c.l.b16 %v414
        %v447 = vpack.c.b16 %v444, %v443
        %v448 = vpack.c.b16 %v446, %v445
        %vm449 = vcmask 31744
        %v451 = vsel %vm449, %v447, 0
        %v454 = vsel %vm449, %v448, 0
        %vm456 = vcmask 1041408
        %v458 = vsel %vm456, %v403, 0
        %v461 = vsel %vm456, %v404, 0
        %463 = vmatprep.subr.bf16.mxu0 %v461
        %464 = vmatpush1.bf16.msra.mxu0 %v458
        %465 = vmatprep.subr.bf16.mxu0 0
        %466 = vmatpush1.bf16.msra.mxu0 0
        %467 = vmatprep.subr.bf16.mxu0 0
        %468 = vmatpush1.bf16.msra.mxu0 0
        %469 = vmatprep.subr.bf16.mxu0 0
        %470 = vmatpush1.bf16.msra.mxu0 0
        %471 = vmatprep.subr.bf16.mxu0 0
        %472 = vmatpush1.bf16.msra.mxu0 0
        %473 = vmatprep.subr.bf16.mxu0 0
        %474 = vmatpush1.bf16.msra.mxu0 0
        %475 = vmatprep.subr.bf16.mxu0 0
        %476 = vmatpush1.bf16.msra.mxu0 0
        %477 = vmatprep.subr.bf16.mxu0 0
        %478 = vmatpush1.bf16.msra.mxu0 0
        %479 = vmatprep.subr.bf16.mxu0 0
        %480 = vmatpush1.bf16.msra.mxu0 0
        %481 = vmatprep.subr.bf16.mxu0 0
        %482 = vmatpush1.bf16.msra.mxu0 0
        %483 = vmatprep.subr.bf16.mxu0 0
        %484 = vmatpush1.bf16.msra.mxu0 0
        %485 = vmatprep.subr.bf16.mxu0 0
        %486 = vmatpush1.bf16.msra.mxu0 0
        %487 = vmatprep.subr.bf16.mxu0 0
        %488 = vmatpush1.bf16.msra.mxu0 0
        %489 = vmatprep.subr.bf16.mxu0 0
        %490 = vmatpush1.bf16.msra.mxu0 0
        %491 = vmatprep.subr.bf16.mxu0 0
        %492 = vmatpush1.bf16.msra.mxu0 0
        %493 = vmatprep.subr.bf16.mxu0 0
        %494 = vmatpush1.bf16.msra.mxu0 0
        %495 = vmatprep.mubr.bf16.mxu0 0
        %496 = vmatmul.mubr.bf16.gmra.mrb[0].mxu0 %v451
        %v497 = vpop.f32.mrb[0].mxu0
        %v498 = vadd.f32 %v422, %v497
        %v499 = vpop.f32.mrb[0].mxu0
        %v500 = vadd.f32 %v422, %v499
        %v501 = vpop.f32.mrb[0].mxu0
        %v502 = vadd.f32 %v427, %v501
        %v503 = vpop.f32.mrb[0].mxu0
        %v504 = vadd.f32 %v427, %v503
        %505 = vmatprep.mubr.bf16.mxu0 0
        %506 = vmatmul.mubr.bf16.gmra.mrb[0].mxu0 %v454
        %v507 = vpop.f32.mrb[0].mxu0
        %v508 = vadd.f32 %v432, %v507
        %v509 = vpop.f32.mrb[0].mxu0
        %v510 = vadd.f32 %v432, %v509
        %v511 = vpop.f32.mrb[0].mxu0
        %v512 = vadd.f32 %v437, %v511
        %v513 = vpop.f32.mrb[0].mxu0
        %v514 = vadd.f32 %v437, %v513
        %515 = vdwg.mxu0
        %v516 = vmax.f32 %v498, 0.0
        %v517 = vmax.f32 %v500, 0.0
        %v518 = vmax.f32 %v502, 0.0
        %v519 = vmax.f32 %v504, 0.0
        %v520 = vmax.f32 %v508, 0.0
        %v521 = vmax.f32 %v510, 0.0
        %v522 = vmax.f32 %v512, 0.0
        %v523 = vmax.f32 %v514, 0.0
        %v524 = vpack.c.bf16 %v518, %v516
        %v525 = vpack.c.bf16 %v519, %v517
        %v526 = vpack.c.bf16 %v522, %v520
        %v527 = vpack.c.bf16 %v523, %v521
        %v528 = vld [vmem:[%s4] sm:$0xf]
        %v529 = vld [vmem:[%s4 + $0x4] sm:$0xf]
        %v530 = vld [vmem:[%s4 + $0x8] sm:$0xf]
        %v531 = vld [vmem:[%s4 + $0xc] sm:$0xf]
        %v532 = vld [vmem:[%s5] sm:$0xff]
        %v533 = vld [vmem:[%s5 + $0x8] sm:$0xff]
        %v534 = vld [vmem:[%s5 + $0x10] sm:$0xff]
        %v535 = vld [vmem:[%s5 + $0x18] sm:$0xff]
        %537 = vset.pattern.permute.xlu0 0
        %538 = vperm.xlu0 %537, %v532
        %v539 = vpop.permute.xlu0 %538
        %542 = vset.pattern.permute.xlu0 0
        %543 = vperm.xlu0 %542, %v533
        %v544 = vpop.permute.xlu0 %543
        %547 = vset.pattern.permute.xlu0 0
        %548 = vperm.xlu0 %547, %v534
        %v549 = vpop.permute.xlu0 %548
        %552 = vset.pattern.permute.xlu0 0
        %553 = vperm.xlu0 %552, %v535
        %v554 = vpop.permute.xlu0 %553
        %v560 = vunpack.c.l.b16 %v528
        %v561 = vunpack.c.l.b16 %v529
        %v562 = vunpack.c.l.b16 %v530
        %v563 = vunpack.c.l.b16 %v531
        %v564 = vpack.c.b16 %v561, %v560
        %v565 = vpack.c.b16 %v563, %v562
        %v567 = vsel %vm449, %v564, 0
        %v570 = vsel %vm449, %v565, 0
        %v573 = vsel %vm456, %v409, 0
        %v576 = vsel %vm456, %v410, 0
        %578 = vmatprep.subr.bf16.mxu0 %v576
        %579 = vmatpush1.bf16.msra.mxu0 %v573
        %580 = vmatprep.subr.bf16.mxu0 0
        %581 = vmatpush1.bf16.msra.mxu0 0
        %582 = vmatprep.subr.bf16.mxu0 0
        %583 = vmatpush1.bf16.msra.mxu0 0
        %584 = vmatprep.subr.bf16.mxu0 0
        %585 = vmatpush1.bf16.msra.mxu0 0
        %586 = vmatprep.subr.bf16.mxu0 0
        %587 = vmatpush1.bf16.msra.mxu0 0
        %588 = vmatprep.subr.bf16.mxu0 0
        %589 = vmatpush1.bf16.msra.mxu0 0
        %590 = vmatprep.subr.bf16.mxu0 0
        %591 = vmatpush1.bf16.msra.mxu0 0
        %592 = vmatprep.subr.bf16.mxu0 0
        %593 = vmatpush1.bf16.msra.mxu0 0
        %594 = vmatprep.subr.bf16.mxu0 0
        %595 = vmatpush1.bf16.msra.mxu0 0
        %596 = vmatprep.subr.bf16.mxu0 0
        %597 = vmatpush1.bf16.msra.mxu0 0
        %598 = vmatprep.subr.bf16.mxu0 0
        %599 = vmatpush1.bf16.msra.mxu0 0
        %600 = vmatprep.subr.bf16.mxu0 0
        %601 = vmatpush1.bf16.msra.mxu0 0
        %602 = vmatprep.subr.bf16.mxu0 0
        %603 = vmatpush1.bf16.msra.mxu0 0
        %604 = vmatprep.subr.bf16.mxu0 0
        %605 = vmatpush1.bf16.msra.mxu0 0
        %606 = vmatprep.subr.bf16.mxu0 0
        %607 = vmatpush1.bf16.msra.mxu0 0
        %608 = vmatprep.subr.bf16.mxu0 0
        %609 = vmatpush1.bf16.msra.mxu0 0
        %610 = vmatprep.mubr.bf16.mxu0 0
        %611 = vmatmul.mubr.bf16.gmra.mrb[0].mxu0 %v567
        %v612 = vpop.f32.mrb[0].mxu0
        %v613 = vadd.f32 %v539, %v612
        %v614 = vpop.f32.mrb[0].mxu0
        %v615 = vadd.f32 %v539, %v614
        %v616 = vpop.f32.mrb[0].mxu0
        %v617 = vadd.f32 %v544, %v616
        %v618 = vpop.f32.mrb[0].mxu0
        %v619 = vadd.f32 %v544, %v618
        %620 = vmatprep.mubr.bf16.mxu0 0
        %621 = vmatmul.mubr.bf16.gmra.mrb[0].mxu0 %v570
        %v622 = vpop.f32.mrb[0].mxu0
        %v623 = vadd.f32 %v549, %v622
        %v624 = vpop.f32.mrb[0].mxu0
        %v625 = vadd.f32 %v549, %v624
        %v626 = vpop.f32.mrb[0].mxu0
        %v627 = vadd.f32 %v554, %v626
        %v628 = vpop.f32.mrb[0].mxu0
        %v629 = vadd.f32 %v554, %v628
        %630 = vdwg.mxu0
        %v631 = vmax.f32 %v613, 0.0
        %v632 = vmax.f32 %v615, 0.0
        %v633 = vmax.f32 %v617, 0.0
        %v634 = vmax.f32 %v619, 0.0
        %v635 = vmax.f32 %v623, 0.0
        %v636 = vmax.f32 %v625, 0.0
        %v637 = vmax.f32 %v627, 0.0
        %v638 = vmax.f32 %v629, 0.0
        %v639 = vpack.c.bf16 %v633, %v631
        %v640 = vpack.c.bf16 %v634, %v632
        %v641 = vpack.c.bf16 %v637, %v635
        %v642 = vpack.c.bf16 %v638, %v636
        %v643 = vld [vmem:[%s6] sm:$0xf]
        %v644 = vld [vmem:[%s6 + $0x4] sm:$0xf]
        %v645 = vld [vmem:[%s7] sm:$0xf]
        %v646 = vld [vmem:[%s7 + $0x4] sm:$0xf]
        %v649 = vunpack.c.l.b16 %v645
        %v650 = vunpack.c.l.b16 %v646
        %v651 = vpack.c.b16 %v650, %v649
        %vm652 = vcmask 261120
        %v654 = vsel %vm652, %v651, 0
        %656 = vmatprep.subr.bf16.mxu0 %v640
        %657 = vmatpush1.bf16.msra.mxu0 %v639
        %658 = vmatprep.subr.bf16.mxu0 %v642
        %659 = vmatpush1.bf16.msra.mxu0 %v641
        %660 = vmatprep.subr.bf16.mxu0 0
        %661 = vmatpush1.bf16.msra.mxu0 0
        %662 = vmatprep.subr.bf16.mxu0 0
        %663 = vmatpush1.bf16.msra.mxu0 0
        %664 = vmatprep.subr.bf16.mxu0 0
        %665 = vmatpush1.bf16.msra.mxu0 0
        %666 = vmatprep.subr.bf16.mxu0 0
        %667 = vmatpush1.bf16.msra.mxu0 0
        %668 = vmatprep.subr.bf16.mxu0 0
        %669 = vmatpush1.bf16.msra.mxu0 0
        %670 = vmatprep.subr.bf16.mxu0 0
        %671 = vmatpush1.bf16.msra.mxu0 0
        %672 = vmatprep.subr.bf16.mxu0 0
        %673 = vmatpush1.bf16.msra.mxu0 0
        %674 = vmatprep.subr.bf16.mxu0 0
        %675 = vmatpush1.bf16.msra.mxu0 0
        %676 = vmatprep.subr.bf16.mxu0 0
        %677 = vmatpush1.bf16.msra.mxu0 0
        %678 = vmatprep.subr.bf16.mxu0 0
        %679 = vmatpush1.bf16.msra.mxu0 0
        %680 = vmatprep.subr.bf16.mxu0 0
        %681 = vmatpush1.bf16.msra.mxu0 0
        %682 = vmatprep.subr.bf16.mxu0 0
        %683 = vmatpush1.bf16.msra.mxu0 0
        %684 = vmatprep.subr.bf16.mxu0 0
        %685 = vmatpush1.bf16.msra.mxu0 0
        %686 = vmatprep.subr.bf16.mxu0 0
        %687 = vmatpush1.bf16.msra.mxu0 0
        %688 = vmatprep.mubr.bf16.mxu0 0
        %689 = vmatmul.mubr.bf16.gmra.mrb[0].mxu0 %v654
        %v690 = vpop.f32.mrb[0].mxu0
        %v691 = vadd.f32 0.0, %v690
        %v692 = vpop.f32.mrb[0].mxu0
        %v693 = vadd.f32 0.0, %v692
        %v694 = vpop.f32.mrb[0].mxu0
        %v695 = vadd.f32 0.0, %v694
        %v696 = vpop.f32.mrb[0].mxu0
        %v697 = vadd.f32 0.0, %v696
        %698 = vdwg.mxu0
        %v701 = vunpack.c.l.b16 %v643
        %v702 = vunpack.c.l.b16 %v644
        %v703 = vpack.c.b16 %v702, %v701
        %v705 = vsel %vm652, %v703, 0
        %707 = vmatprep.subr.bf16.mxu0 %v525
        %708 = vmatpush1.bf16.msra.mxu0 %v524
        %709 = vmatprep.subr.bf16.mxu0 %v527
        %710 = vmatpush1.bf16.msra.mxu0 %v526
        %711 = vmatprep.subr.bf16.mxu0 0
        %712 = vmatpush1.bf16.msra.mxu0 0
        %713 = vmatprep.subr.bf16.mxu0 0
        %714 = vmatpush1.bf16.msra.mxu0 0
        %715 = vmatprep.subr.bf16.mxu0 0
        %716 = vmatpush1.bf16.msra.mxu0 0
        %717 = vmatprep.subr.bf16.mxu0 0
        %718 = vmatpush1.bf16.msra.mxu0 0
        %719 = vmatprep.subr.bf16.mxu0 0
        %720 = vmatpush1.bf16.msra.mxu0 0
        %721 = vmatprep.subr.bf16.mxu0 0
        %722 = vmatpush1.bf16.msra.mxu0 0
        %723 = vmatprep.subr.bf16.mxu0 0
        %724 = vmatpush1.bf16.msra.mxu0 0
        %725 = vmatprep.subr.bf16.mxu0 0
        %726 = vmatpush1.bf16.msra.mxu0 0
        %727 = vmatprep.subr.bf16.mxu0 0
        %728 = vmatpush1.bf16.msra.mxu0 0
        %729 = vmatprep.subr.bf16.mxu0 0
        %730 = vmatpush1.bf16.msra.mxu0 0
        %731 = vmatprep.subr.bf16.mxu0 0
        %732 = vmatpush1.bf16.msra.mxu0 0
        %733 = vmatprep.subr.bf16.mxu0 0
        %734 = vmatpush1.bf16.msra.mxu0 0
        %735 = vmatprep.subr.bf16.mxu0 0
        %736 = vmatpush1.bf16.msra.mxu0 0
        %737 = vmatprep.subr.bf16.mxu0 0
        %738 = vmatpush1.bf16.msra.mxu0 0
        %739 = vmatprep.mubr.bf16.mxu0 0
        %740 = vmatmul.mubr.bf16.gmra.mrb[0].mxu0 %v705
        %v741 = vpop.f32.mrb[0].mxu0
        %v742 = vadd.f32 %v691, %v741
        %v743 = vpop.f32.mrb[0].mxu0
        %v744 = vadd.f32 %v693, %v743
        %v745 = vpop.f32.mrb[0].mxu0
        %v746 = vadd.f32 %v695, %v745
        %v747 = vpop.f32.mrb[0].mxu0
        %v748 = vadd.f32 %v697, %v747
        %749 = vdwg.mxu0
        %v750 = vld [vmem:[%s8] sm:$0xff]
        %v751 = vld [vmem:[%s8 + $0x8] sm:$0xff]
        %753 = vset.pattern.permute.xlu0 0
        %754 = vperm.xlu0 %753, %v750
        %v755 = vpop.permute.xlu0 %754
        %758 = vset.pattern.permute.xlu0 0
        %759 = vperm.xlu0 %758, %v751
        %v760 = vpop.permute.xlu0 %759
        %v762 = vadd.f32 %v742, %v755
        %v763 = vadd.f32 %v744, %v755
        %v764 = vadd.f32 %v746, %v760
        %v765 = vadd.f32 %v748, %v760
        %v766 = vpack.c.bf16 %v764, %v762
        %v767 = vpack.c.bf16 %v765, %v763
        %v770 = vunpack.c.l.b16 %v766
        %v771 = vunpack.c.l.b16 %v767
        %v772 = vunpack.c.h.b16 %v766
        %v773 = vunpack.c.h.b16 %v767
        %v774 = vpack.c.b16 %v771, %v770
        %v775 = vpack.c.b16 %v773, %v772
        %778 = vst [vmem:[%s376] sm:$0xff] %v774
        %779 = vst [vmem:[%s376 + $0x8] sm:$0xff] %v775
        %s780 = sand.u32 %s248, 1
        %s781 = scalar_lea.sflag [#allocation3], %s780
        %s782 = sand.u32 %s248, 1
        %s783 = smul.addr %s782, 16
        %s784 = scalar_lea.vmem [#allocation2], %s783
        // Predicated region
        $region57: #{tpu_custom_call.1} parent=55 // pred_check
          %p785 = pneg %p258
        $region58: #{tpu_custom_call.1} parent=55 // pred_check_branch
          %787 = sbr.rel (%p785) target = $region60
        $region59: #{tpu_custom_call.1} parent=55 // pred_region
          %s788 = smul.u32 2, %s28
          %s790 = ssub.s32 256, 256
          %791 = vsyncadd %s781, %s790
          %s792 = smul.addr %s27, 4
          %s793 = sadd.s32 %s788, %s792
          %s794 = smul.addr %s793, 64
          %s795 = scalar_lea.hbm %s9, %s794
          %s796 = sshll.u32 %s784, 4
          %s797 = int_to_ptr.vmem [resolvable:$true] %s796
          %802 = dma.vmem_to_hbm [thread:$0]  %s797, 256, %s795, %s781, 128, 128, 8
        $region60: #{tpu_custom_call.1} parent=55 // pred_fallthru
          _
      $region56: #{tpu_custom_call.1} parent=5 // pred_fallthru
        _
      %p803 = scmp.le.s32.totalorder 2, %s18
      // Predicated region
      $region61: #{tpu_custom_call.1} parent=5 // pred_check
        %p804 = pneg %p803
      $region62: #{tpu_custom_call.1} parent=5 // pred_check_branch
        %806 = sbr.rel (%p804) target = $region64
      $region63: #{tpu_custom_call.1} parent=5 // pred_region
        %s807 = ssub.s32 %s18, 2
        // Predicated region
        $region65: #{tpu_custom_call.1} parent=63 // pred_check
          %p808 = pneg %p264
        $region66: #{tpu_custom_call.1} parent=63 // pred_check_branch
          %810 = sbr.rel (%p808) target = $region68
        $region67: #{tpu_custom_call.1} parent=63 // pred_region
          %s811 = sand.u32 %s249, 1
          %s812 = scalar_lea.sflag [#allocation3], %s811
          %s813 = sand.u32 %s249, 1
          %s814 = smul.addr %s813, 16
          %s815 = scalar_lea.vmem [#allocation2], %s814
          %816 = dma.done %s812, 256
        $region68: #{tpu_custom_call.1} parent=63 // pred_fallthru
          _
      $region64: #{tpu_custom_call.1} parent=5 // pred_fallthru
        _
    $region6: #{tpu_custom_call.1} parent=1 // loop_footer
      %s22 = sadd.s32 1, %s18
    $region7: #{tpu_custom_call.1} parent=1 // loop_footer_branch
      %17 = sbr.rel target = $region3
    $region8: #{tpu_custom_call.1} parent=1 // loop_exit
      _
    %817 = vsyncpa [#allocation3], 1
    %s818 = scalar_lea.sflag [#allocation3], 1
    %819 = vsyncpa %s818, 1

</llo_original>
